<compile_context>
chip_gen: v5e
topology: v5e:2x2
jax: 0.10.0
libtpu: 0.0.40
codegen_flags: <defaults>
</compile_context>

<pallas_src>
import functools
import math

import jax
import jax.numpy as jnp
from jax import lax
from jax.experimental import pallas as pl
from jax.experimental.pallas import tpu as pltpu

EPS = 1e-5


def _round_up(x, m):
    return (x + m - 1) // m * m


def _bn_cols(v, par, inv_n):
    """Training-mode BatchNorm1d over the batch (sublane) axis of a lane tile.

    par is a (2, T) tile: row 0 = gamma, row 1 = beta.  Uses the one-pass
    var = E[v^2] - mean^2 form and folds gamma/beta into scale/shift."""
    g = par[0:1, :]
    b = par[1:2, :]
    s1 = jnp.sum(v, axis=0, keepdims=True) * inv_n           # mean
    s2 = jnp.sum(v * v, axis=0, keepdims=True) * inv_n       # E[v^2]
    var = jnp.maximum(s2 - s1 * s1, 0.0)
    scale = g * lax.rsqrt(var + EPS)                          # EUP rsqrt
    return v * scale + (b - s1 * scale)


def _fused_kernel(n_batch, x_ref, wt_ref, par_ref, o_ref, acc_ref):
    """Grid = (n_y + 2, n_k).

    j == 0        : z-min row -- BN(min(x1, x2)) for feature tile k
    1 <= j <= n_y : y rows    -- accumulate stacked matmul over k, finalize
                                 BN(max(y1, y2)) at the last k
    j == n_y + 1  : z-max row -- BN(max(x1, x2)) for feature tile k
    """
    j = pl.program_id(0)
    k = pl.program_id(1)
    n_y = pl.num_programs(0) - 2
    n_k = pl.num_programs(1)
    inv_n = 1.0 / n_batch
    is_y = jnp.logical_and(j >= 1, j <= n_y)

    # ---------------- y rows: shared-Linear matmul accumulation -------------
    @pl.when(jnp.logical_and(is_y, k == 0))
    def _():
        acc_ref[...] = jnp.zeros_like(acc_ref)

    @pl.when(is_y)
    def _():
        # bf16 x bf16 -> f32 on the MXU; the stacked (2N, T) LHS covers both
        # braid streams with a single weight push per K step.
        acc_ref[...] += jnp.dot(x_ref[...], wt_ref[...],
                                preferred_element_type=jnp.float32)

    @pl.when(jnp.logical_and(is_y, k == n_k - 1))
    def _():
        acc = acc_ref[...]
        # AndLinear bias is omitted: BN(max(y1+b, y2+b)) == BN(max(y1, y2)).
        v = jnp.maximum(acc[:n_batch], acc[n_batch:])
        o_ref[...] = _bn_cols(v, par_ref[...], inv_n).astype(o_ref.dtype)

    # ---------------- z rows: BN of min / max of the braid pair -------------
    @pl.when(j == 0)
    def _():
        xt = x_ref[...].astype(jnp.float32)       # BN math stays f32
        v = jnp.minimum(xt[:n_batch], xt[n_batch:])
        o_ref[...] = _bn_cols(v, par_ref[...], inv_n).astype(o_ref.dtype)

    @pl.when(j == n_y + 1)
    def _():
        xt = x_ref[...].astype(jnp.float32)
        v = jnp.maximum(xt[:n_batch], xt[n_batch:])
        o_ref[...] = _bn_cols(v, par_ref[...], inv_n).astype(o_ref.dtype)


def _select_tile_and_vmem(n_batch, cin_p, cout_p):
    """Pick the largest lane-dense tile dividing both padded channel counts
    that fits the generation's VMEM budget, and an honest vmem_limit request."""
    try:
        phys = int(pltpu.get_tpu_info().vmem_capacity_bytes)
    except Exception:
        phys = 64 << 20                       # conservative: v7x per-TC VMEM
    budget = int(phys * 0.55)

    g = 128 * math.gcd(cin_p // 128, cout_p // 128)

    def vmem_need(t):
        # x (2N,t) bf16 x2buf + out (N,t) f32 x2buf + acc (2N,t) f32
        #   + W^T (t,t) bf16 x2buf + params (2,t) f32 x2buf
        return 24 * n_batch * t + 4 * t * t + 64 * t

    tile = 128
    for cand in range(min(g, 1024), 127, -128):
        if g % cand == 0 and vmem_need(cand) <= budget:
            tile = cand
            break

    need = vmem_need(tile) + (1 << 20)        # + internal scratch headroom
    vmem_limit = max(min(phys - (2 << 20), need + (8 << 20)), 16 << 20)
    return tile, int(vmem_limit)


def aaa_block_forward(x1, x2, w, b, gamma_y, beta_y, gamma_z, beta_z):
    """AAABlock.forward for a braid pair of 2-D inputs.

    x1, x2          : (N, Cin)              braid streams
    w, b            : (Cout, Cin), (Cout,)  shared AndLinear params
    gamma_y, beta_y : (Cout,)               MaxY BatchNorm1d affine
    gamma_z, beta_z : (2*Cin,)              MinMaxY BatchNorm1d affine
    returns         : (N, Cout + 2*Cin) f32

    The AndLinear bias `b` is accepted for interface fidelity but does not
    affect the forward output (training-mode BN is shift invariant).  x is
    quantized to bfloat16 at the kernel boundary (MXU native, half the HBM
    traffic); BN statistics and normalization are computed in f32.
    """
    N, Cin = x1.shape
    Cout = w.shape[0]
    del b  # BN(max(y1+b, y2+b)) == BN(max(y1, y2)); see docstring.
    f32, bf16 = jnp.float32, jnp.bfloat16

    Cin_p = _round_up(Cin, 128)
    Cout_p = _round_up(Cout, 128)
    Wp = Cout_p + 2 * Cin_p

    tile, vmem_limit = _select_tile_and_vmem(N, Cin_p, Cout_p)
    n_k = Cin_p // tile              # K tiles == z feature tiles
    n_y = Cout_p // tile             # y output tiles
    n_j = n_y + 2                    # [z-min row | y rows | z-max row]

    # Stacked braid LHS (2N, Cin_p) bf16: one HBM stream feeds both the shared
    # Linear and the min/max branch.  W^T padded to (Cin_p, Cout_p) bf16.
    x = jnp.concatenate([x1, x2], axis=0).astype(bf16)
    x = jnp.pad(x, ((0, 0), (0, Cin_p - Cin)))
    wt = jnp.pad(jnp.transpose(w).astype(bf16),
                 ((0, Cin_p - Cin), (0, Cout_p - Cout)))

    def _padf(v, n, fill):
        v = v.astype(f32).reshape(-1)
        return jnp.pad(v, (0, n - v.shape[0]), constant_values=fill)

    # gamma/beta laid out to match the fused output columns [y | z-min | z-max].
    gamma_all = jnp.concatenate([_padf(gamma_y, Cout_p, 1.0),
                                 _padf(gamma_z[:Cin], Cin_p, 1.0),
                                 _padf(gamma_z[Cin:], Cin_p, 1.0)])
    beta_all = jnp.concatenate([_padf(beta_y, Cout_p, 0.0),
                                _padf(beta_z[:Cin], Cin_p, 0.0),
                                _padf(beta_z[Cin:], Cin_p, 0.0)])
    par = jnp.stack([gamma_all, beta_all])          # (2, Wp)

    def col_map(j, k):
        # Output / param column block: z-min tiles live at [n_y, n_y+n_k),
        # y tiles at [0, n_y), z-max tiles at [n_y+n_k, n_y+2*n_k).
        return (0, jnp.where(j == 0, n_y + k,
                             jnp.where(j <= n_y, j - 1, n_y + n_k + k)))

    def wt_map(j, k):
        is_y = jnp.logical_and(j >= 1, j <= n_y)
        return (jnp.where(is_y, k, 0), jnp.clip(j - 1, 0, n_y - 1))

    out = pl.pallas_call(
        functools.partial(_fused_kernel, N),
        out_shape=jax.ShapeDtypeStruct((N, Wp), f32),
        grid_spec=pltpu.PrefetchScalarGridSpec(
            num_scalar_prefetch=0,
            grid=(n_j, n_k),
            in_specs=[
                pl.BlockSpec((2 * N, tile), lambda j, k: (0, k)),   # stacked x
                pl.BlockSpec((tile, tile), wt_map),                 # W^T
                pl.BlockSpec((2, tile), col_map),                   # gamma/beta
            ],
            out_specs=pl.BlockSpec((N, tile), col_map),
            scratch_shapes=[pltpu.VMEM((2 * N, tile), f32)],        # matmul acc
        ),
        compiler_params=pltpu.CompilerParams(
            dimension_semantics=("parallel", "arbitrary"),
            vmem_limit_bytes=vmem_limit,
        ),
    )(x, wt, par)

    if Cin_p == Cin and Cout_p == Cout:
        return out                  # fully fused: no trailing concat pass
    # Unaligned channel counts: strip the feature padding (the only path that
    # still needs a copy over the result).
    return jnp.concatenate(
        [out[:, :Cout],
         out[:, Cout_p:Cout_p + Cin],
         out[:, Cout_p + Cin_p:Cout_p + Cin_p + Cin]], axis=1)


# --------------------------------- reference --------------------------------
def _reference(x1, x2, w, b, gamma_y, beta_y, gamma_z, beta_z):
    def bn1d(v, g, be):
        m = jnp.mean(v, axis=0, keepdims=True)
        var = jnp.mean((v - m) ** 2, axis=0, keepdims=True)
        return (v - m) * lax.rsqrt(var + EPS) * g[None, :] + be[None, :]

    y1 = jnp.dot(x1, w.T, precision=lax.Precision.HIGHEST) + b[None, :]
    y2 = jnp.dot(x2, w.T, precision=lax.Precision.HIGHEST) + b[None, :]
    y = bn1d(jnp.maximum(y1, y2), gamma_y, beta_y)
    z = bn1d(jnp.concatenate([jnp.minimum(x1, x2), jnp.maximum(x1, x2)], axis=1),
             gamma_z, beta_z)
    return jnp.concatenate([y, z], axis=1)


if __name__ == "__main__":
    def run_case(n, c_in, c_out, seed):
        key = jax.random.PRNGKey(seed)
        k1, k2, k3, k4, k5, k6, k7 = jax.random.split(key, 7)

        # Snap inputs/weights to the bf16 grid so the bf16 MXU path and the f32
        # reference agree to f32 rounding.
        def q(a):
            return a.astype(jnp.bfloat16).astype(jnp.float32)

        x1 = q(jax.random.normal(k1, (n, c_in), dtype=jnp.float32))
        x2 = q(jax.random.normal(k2, (n, c_in), dtype=jnp.float32))
        w = q(jax.random.normal(k3, (c_out, c_in), dtype=jnp.float32)
              / math.sqrt(c_in))
        b = 0.1 * jax.random.normal(k4, (c_out,), dtype=jnp.float32)
        gamma_y = 1.0 + 0.1 * jax.random.normal(k5, (c_out,), dtype=jnp.float32)
        beta_y = 0.1 * jax.random.normal(k6, (c_out,), dtype=jnp.float32)
        gamma_z = 1.0 + 0.1 * jax.random.normal(k7, (2 * c_in,), dtype=jnp.float32)
        beta_z = 0.05 * jnp.arange(2 * c_in, dtype=jnp.float32) / (2 * c_in)

        out = jax.block_until_ready(
            jax.jit(aaa_block_forward)(x1, x2, w, b, gamma_y, beta_y,
                                       gamma_z, beta_z))
        ref = _reference(x1, x2, w, b, gamma_y, beta_y, gamma_z, beta_z)

        assert out.shape == (n, c_out + 2 * c_in), out.shape
        err = float(jnp.max(jnp.abs(out - ref)))
        assert err < 1e-3, (n, c_in, c_out, err)

    # Lane-aligned channels: fully fused path, multi-step K accumulation,
    # z-min / y / z-max rows all exercised.
    run_case(16, 256, 384, 0)
    # Tiny unaligned channels: padded fallback path.
    run_case(8, 8, 16, 1)
    print("KERNEL_OK")
</pallas_src>

<mosaic_0001>
module attributes {stable_mosaic.version = 11 : i64} {
  func.func @_fused_kernel(%arg0: i32, %arg1: i32, %arg2: memref<32x128xbf16, #tpu.memory_space<vmem>>, %arg3: memref<128x128xbf16, #tpu.memory_space<vmem>>, %arg4: memref<2x128xf32, #tpu.memory_space<vmem>>, %arg5: memref<16x128xf32, #tpu.memory_space<vmem>>, %arg6: memref<32x128xf32, #tpu.memory_space<vmem>>) attributes {dimension_semantics = [#tpu.dimension_semantics<parallel>, #tpu.dimension_semantics<arbitrary>], iteration_bounds = array<i64: 5, 2>, scalar_prefetch = 0 : i64, scratch_operands = 1 : i64, tpu.core_type = #tpu.core_type<tc>, window_params = [{transform_indices = @transform_0, window_bounds = array<i64: 32, 128>}, {transform_indices = @transform_1, window_bounds = array<i64: 128, 128>}, {transform_indices = @transform_2, window_bounds = array<i64: 2, 128>}, {transform_indices = @transform_3, window_bounds = array<i64: 16, 128>}]} {
    %c1_i32 = arith.constant 1 : i32
    %0 = arith.cmpi sge, %arg0, %c1_i32 : i32
    %c3_i32 = arith.constant 3 : i32
    %1 = arith.cmpi sle, %arg0, %c3_i32 : i32
    %2 = arith.andi %0, %1 : i1
    %c0_i32 = arith.constant 0 : i32
    %3 = arith.cmpi eq, %arg1, %c0_i32 : i32
    %4 = arith.andi %2, %3 : i1
    %5 = arith.extui %4 : i1 to i32
    %c0_i32_0 = arith.constant 0 : i32
    %6 = arith.cmpi ne, %5, %c0_i32_0 : i32
    scf.if %6 {
      %cst = arith.constant 0.000000e+00 : f32
      %19 = vector.broadcast %cst : f32 to vector<32x128xf32>
      %c0 = arith.constant 0 : index
      %c0_7 = arith.constant 0 : index
      %20 = vector.load %arg6[%c0, %c0_7] : memref<32x128xf32, #tpu.memory_space<vmem>>, vector<32x128xf32>
      tpu.vector_store %arg6[%c0, %c0_7], %19 {strides = array<i32>} : memref<32x128xf32, #tpu.memory_space<vmem>>, vector<32x128xf32>,
    } else {
    }
    %7 = arith.extui %2 : i1 to i32
    %c0_i32_1 = arith.constant 0 : i32
    %8 = arith.cmpi ne, %7, %c0_i32_1 : i32
    scf.if %8 {
      %c0 = arith.constant 0 : index
      %c0_7 = arith.constant 0 : index
      %19 = vector.load %arg6[%c0, %c0_7] : memref<32x128xf32, #tpu.memory_space<vmem>>, vector<32x128xf32>
      %c0_8 = arith.constant 0 : index
      %c0_9 = arith.constant 0 : index
      %20 = vector.load %arg2[%c0_8, %c0_9] : memref<32x128xbf16, #tpu.memory_space<vmem>>, vector<32x128xbf16>
      %c0_10 = arith.constant 0 : index
      %c0_11 = arith.constant 0 : index
      %21 = vector.load %arg3[%c0_10, %c0_11] : memref<128x128xbf16, #tpu.memory_space<vmem>>, vector<128x128xbf16>
      %cst = arith.constant dense<0.000000e+00> : vector<32x128xf32>
      %22 = tpu.matmul %20, %21, %cst {dimension_numbers = #tpu.dot_dimension_numbers<[1], [0], [0], [1], [0, 0, 1, 1], [], []>} : vector<32x128xbf16>, vector<128x128xbf16>, vector<32x128xf32> -> vector<32x128xf32>
      %23 = arith.addf %19, %22 : vector<32x128xf32>
      %c0_12 = arith.constant 0 : index
      %c0_13 = arith.constant 0 : index
      %24 = vector.load %arg6[%c0_12, %c0_13] : memref<32x128xf32, #tpu.memory_space<vmem>>, vector<32x128xf32>
      tpu.vector_store %arg6[%c0_12, %c0_13], %23 {strides = array<i32>} : memref<32x128xf32, #tpu.memory_space<vmem>>, vector<32x128xf32>,
    } else {
    }
    %c1_i32_2 = arith.constant 1 : i32
    %9 = arith.cmpi eq, %arg1, %c1_i32_2 : i32
    %10 = arith.andi %2, %9 : i1
    %11 = arith.extui %10 : i1 to i32
    %c0_i32_3 = arith.constant 0 : i32
    %12 = arith.cmpi ne, %11, %c0_i32_3 : i32
    scf.if %12 {
      %c0 = arith.constant 0 : index
      %c0_7 = arith.constant 0 : index
      %19 = vector.load %arg6[%c0, %c0_7] : memref<32x128xf32, #tpu.memory_space<vmem>>, vector<32x128xf32>
      %20 = vector.extract_strided_slice %19 {offsets = [0, 0], sizes = [16, 128], strides = [1, 1]} : vector<32x128xf32> to vector<16x128xf32>
      %21 = vector.extract_strided_slice %19 {offsets = [16, 0], sizes = [16, 128], strides = [1, 1]} : vector<32x128xf32> to vector<16x128xf32>
      %22 = arith.maximumf %20, %21 : vector<16x128xf32>
      %c0_8 = arith.constant 0 : index
      %c0_9 = arith.constant 0 : index
      %23 = vector.load %arg4[%c0_8, %c0_9] : memref<2x128xf32, #tpu.memory_space<vmem>>, vector<2x128xf32>
      %24 = vector.extract_strided_slice %23 {offsets = [0, 0], sizes = [1, 128], strides = [1, 1]} : vector<2x128xf32> to vector<1x128xf32>
      %25 = vector.extract_strided_slice %23 {offsets = [1, 0], sizes = [1, 128], strides = [1, 1]} : vector<2x128xf32> to vector<1x128xf32>
      %cst = arith.constant dense<0.000000e+00> : vector<128xf32>
      %26 = vector.multi_reduction <add>, %22, %cst [0] : vector<16x128xf32> to vector<128xf32>
      %27 = vector.shape_cast %26 : vector<128xf32> to vector<1x128xf32>
      %cst_10 = arith.constant 6.250000e-02 : f32
      %28 = vector.broadcast %cst_10 : f32 to vector<1x128xf32>
      %29 = arith.mulf %27, %28 : vector<1x128xf32>
      %30 = arith.mulf %22, %22 : vector<16x128xf32>
      %cst_11 = arith.constant dense<0.000000e+00> : vector<128xf32>
      %31 = vector.multi_reduction <add>, %30, %cst_11 [0] : vector<16x128xf32> to vector<128xf32>
      %32 = vector.shape_cast %31 : vector<128xf32> to vector<1x128xf32>
      %cst_12 = arith.constant 6.250000e-02 : f32
      %33 = vector.broadcast %cst_12 : f32 to vector<1x128xf32>
      %34 = arith.mulf %32, %33 : vector<1x128xf32>
      %35 = arith.mulf %29, %29 : vector<1x128xf32>
      %36 = arith.subf %34, %35 : vector<1x128xf32>
      %cst_13 = arith.constant 0.000000e+00 : f32
      %37 = vector.broadcast %cst_13 : f32 to vector<1x128xf32>
      %38 = arith.maximumf %36, %37 : vector<1x128xf32>
      %cst_14 = arith.constant 9.99999974E-6 : f32
      %39 = vector.broadcast %cst_14 : f32 to vector<1x128xf32>
      %40 = arith.addf %38, %39 : vector<1x128xf32>
      %41 = math.rsqrt %40 : vector<1x128xf32>
      %42 = arith.mulf %24, %41 : vector<1x128xf32>
      %43 = vector.broadcast %42 : vector<1x128xf32> to vector<16x128xf32>
      %44 = arith.mulf %22, %43 : vector<16x128xf32>
      %45 = arith.mulf %29, %42 : vector<1x128xf32>
      %46 = arith.subf %25, %45 : vector<1x128xf32>
      %47 = vector.broadcast %46 : vector<1x128xf32> to vector<16x128xf32>
      %48 = arith.addf %44, %47 : vector<16x128xf32>
      %c0_15 = arith.constant 0 : index
      %c0_16 = arith.constant 0 : index
      %49 = vector.load %arg5[%c0_15, %c0_16] : memref<16x128xf32, #tpu.memory_space<vmem>>, vector<16x128xf32>
      tpu.vector_store %arg5[%c0_15, %c0_16], %48 {strides = array<i32>} : memref<16x128xf32, #tpu.memory_space<vmem>>, vector<16x128xf32>,
    } else {
    }
    %c0_i32_4 = arith.constant 0 : i32
    %13 = arith.cmpi eq, %arg0, %c0_i32_4 : i32
    %14 = arith.extui %13 : i1 to i32
    %c0_i32_5 = arith.constant 0 : i32
    %15 = arith.cmpi ne, %14, %c0_i32_5 : i32
    scf.if %15 {
      %c0 = arith.constant 0 : index
      %c0_7 = arith.constant 0 : index
      %19 = vector.load %arg2[%c0, %c0_7] : memref<32x128xbf16, #tpu.memory_space<vmem>>, vector<32x128xbf16>
      %20 = arith.extf %19 : vector<32x128xbf16> to vector<32x128xf32>
      %21 = vector.extract_strided_slice %20 {offsets = [0, 0], sizes = [16, 128], strides = [1, 1]} : vector<32x128xf32> to vector<16x128xf32>
      %22 = vector.extract_strided_slice %20 {offsets = [16, 0], sizes = [16, 128], strides = [1, 1]} : vector<32x128xf32> to vector<16x128xf32>
      %23 = arith.minimumf %21, %22 : vector<16x128xf32>
      %c0_8 = arith.constant 0 : index
      %c0_9 = arith.constant 0 : index
      %24 = vector.load %arg4[%c0_8, %c0_9] : memref<2x128xf32, #tpu.memory_space<vmem>>, vector<2x128xf32>
      %25 = vector.extract_strided_slice %24 {offsets = [0, 0], sizes = [1, 128], strides = [1, 1]} : vector<2x128xf32> to vector<1x128xf32>
      %26 = vector.extract_strided_slice %24 {offsets = [1, 0], sizes = [1, 128], strides = [1, 1]} : vector<2x128xf32> to vector<1x128xf32>
      %cst = arith.constant dense<0.000000e+00> : vector<128xf32>
      %27 = vector.multi_reduction <add>, %23, %cst [0] : vector<16x128xf32> to vector<128xf32>
      %28 = vector.shape_cast %27 : vector<128xf32> to vector<1x128xf32>
      %cst_10 = arith.constant 6.250000e-02 : f32
      %29 = vector.broadcast %cst_10 : f32 to vector<1x128xf32>
      %30 = arith.mulf %28, %29 : vector<1x128xf32>
      %31 = arith.mulf %23, %23 : vector<16x128xf32>
      %cst_11 = arith.constant dense<0.000000e+00> : vector<128xf32>
      %32 = vector.multi_reduction <add>, %31, %cst_11 [0] : vector<16x128xf32> to vector<128xf32>
      %33 = vector.shape_cast %32 : vector<128xf32> to vector<1x128xf32>
      %cst_12 = arith.constant 6.250000e-02 : f32
      %34 = vector.broadcast %cst_12 : f32 to vector<1x128xf32>
      %35 = arith.mulf %33, %34 : vector<1x128xf32>
      %36 = arith.mulf %30, %30 : vector<1x128xf32>
      %37 = arith.subf %35, %36 : vector<1x128xf32>
      %cst_13 = arith.constant 0.000000e+00 : f32
      %38 = vector.broadcast %cst_13 : f32 to vector<1x128xf32>
      %39 = arith.maximumf %37, %38 : vector<1x128xf32>
      %cst_14 = arith.constant 9.99999974E-6 : f32
      %40 = vector.broadcast %cst_14 : f32 to vector<1x128xf32>
      %41 = arith.addf %39, %40 : vector<1x128xf32>
      %42 = math.rsqrt %41 : vector<1x128xf32>
      %43 = arith.mulf %25, %42 : vector<1x128xf32>
      %44 = vector.broadcast %43 : vector<1x128xf32> to vector<16x128xf32>
      %45 = arith.mulf %23, %44 : vector<16x128xf32>
      %46 = arith.mulf %30, %43 : vector<1x128xf32>
      %47 = arith.subf %26, %46 : vector<1x128xf32>
      %48 = vector.broadcast %47 : vector<1x128xf32> to vector<16x128xf32>
      %49 = arith.addf %45, %48 : vector<16x128xf32>
      %c0_15 = arith.constant 0 : index
      %c0_16 = arith.constant 0 : index
      %50 = vector.load %arg5[%c0_15, %c0_16] : memref<16x128xf32, #tpu.memory_space<vmem>>, vector<16x128xf32>
      tpu.vector_store %arg5[%c0_15, %c0_16], %49 {strides = array<i32>} : memref<16x128xf32, #tpu.memory_space<vmem>>, vector<16x128xf32>,
    } else {
    }
    %c4_i32 = arith.constant 4 : i32
    %16 = arith.cmpi eq, %arg0, %c4_i32 : i32
    %17 = arith.extui %16 : i1 to i32
    %c0_i32_6 = arith.constant 0 : i32
    %18 = arith.cmpi ne, %17, %c0_i32_6 : i32
    scf.if %18 {
      %c0 = arith.constant 0 : index
      %c0_7 = arith.constant 0 : index
      %19 = vector.load %arg2[%c0, %c0_7] : memref<32x128xbf16, #tpu.memory_space<vmem>>, vector<32x128xbf16>
      %20 = arith.extf %19 : vector<32x128xbf16> to vector<32x128xf32>
      %21 = vector.extract_strided_slice %20 {offsets = [0, 0], sizes = [16, 128], strides = [1, 1]} : vector<32x128xf32> to vector<16x128xf32>
      %22 = vector.extract_strided_slice %20 {offsets = [16, 0], sizes = [16, 128], strides = [1, 1]} : vector<32x128xf32> to vector<16x128xf32>
      %23 = arith.maximumf %21, %22 : vector<16x128xf32>
      %c0_8 = arith.constant 0 : index
      %c0_9 = arith.constant 0 : index
      %24 = vector.load %arg4[%c0_8, %c0_9] : memref<2x128xf32, #tpu.memory_space<vmem>>, vector<2x128xf32>
      %25 = vector.extract_strided_slice %24 {offsets = [0, 0], sizes = [1, 128], strides = [1, 1]} : vector<2x128xf32> to vector<1x128xf32>
      %26 = vector.extract_strided_slice %24 {offsets = [1, 0], sizes = [1, 128], strides = [1, 1]} : vector<2x128xf32> to vector<1x128xf32>
      %cst = arith.constant dense<0.000000e+00> : vector<128xf32>
      %27 = vector.multi_reduction <add>, %23, %cst [0] : vector<16x128xf32> to vector<128xf32>
      %28 = vector.shape_cast %27 : vector<128xf32> to vector<1x128xf32>
      %cst_10 = arith.constant 6.250000e-02 : f32
      %29 = vector.broadcast %cst_10 : f32 to vector<1x128xf32>
      %30 = arith.mulf %28, %29 : vector<1x128xf32>
      %31 = arith.mulf %23, %23 : vector<16x128xf32>
      %cst_11 = arith.constant dense<0.000000e+00> : vector<128xf32>
      %32 = vector.multi_reduction <add>, %31, %cst_11 [0] : vector<16x128xf32> to vector<128xf32>
      %33 = vector.shape_cast %32 : vector<128xf32> to vector<1x128xf32>
      %cst_12 = arith.constant 6.250000e-02 : f32
      %34 = vector.broadcast %cst_12 : f32 to vector<1x128xf32>
      %35 = arith.mulf %33, %34 : vector<1x128xf32>
      %36 = arith.mulf %30, %30 : vector<1x128xf32>
      %37 = arith.subf %35, %36 : vector<1x128xf32>
      %cst_13 = arith.constant 0.000000e+00 : f32
      %38 = vector.broadcast %cst_13 : f32 to vector<1x128xf32>
      %39 = arith.maximumf %37, %38 : vector<1x128xf32>
      %cst_14 = arith.constant 9.99999974E-6 : f32
      %40 = vector.broadcast %cst_14 : f32 to vector<1x128xf32>
      %41 = arith.addf %39, %40 : vector<1x128xf32>
      %42 = math.rsqrt %41 : vector<1x128xf32>
      %43 = arith.mulf %25, %42 : vector<1x128xf32>
      %44 = vector.broadcast %43 : vector<1x128xf32> to vector<16x128xf32>
      %45 = arith.mulf %23, %44 : vector<16x128xf32>
      %46 = arith.mulf %30, %43 : vector<1x128xf32>
      %47 = arith.subf %26, %46 : vector<1x128xf32>
      %48 = vector.broadcast %47 : vector<1x128xf32> to vector<16x128xf32>
      %49 = arith.addf %45, %48 : vector<16x128xf32>
      %c0_15 = arith.constant 0 : index
      %c0_16 = arith.constant 0 : index
      %50 = vector.load %arg5[%c0_15, %c0_16] : memref<16x128xf32, #tpu.memory_space<vmem>>, vector<16x128xf32>
      tpu.vector_store %arg5[%c0_15, %c0_16], %49 {strides = array<i32>} : memref<16x128xf32, #tpu.memory_space<vmem>>, vector<16x128xf32>,
    } else {
    }
    return
  }
  func.func @transform_0(%arg0: i32, %arg1: i32) -> (i32, i32) {
    %c0_i32 = arith.constant 0 : i32
    %c0_i32_0 = arith.constant 0 : i32
    return %c0_i32, %arg1 : i32, i32
  }
  func.func @transform_1(%arg0: i32, %arg1: i32) -> (i32, i32) {
    %c1_i32 = arith.constant 1 : i32
    %0 = arith.cmpi sge, %arg0, %c1_i32 : i32
    %c3_i32 = arith.constant 3 : i32
    %1 = arith.cmpi sle, %arg0, %c3_i32 : i32
    %2 = arith.andi %0, %1 : i1
    %c0_i32 = arith.constant 0 : i32
    %3 = arith.select %2, %arg1, %c0_i32 : i32
    %c1_i32_0 = arith.constant 1 : i32
    %4 = arith.subi %arg0, %c1_i32_0 : i32
    %c0_i32_1 = arith.constant 0 : i32
    %c2_i32 = arith.constant 2 : i32
    %5 = arith.maxsi %c0_i32_1, %4 : i32
    %6 = arith.minsi %c2_i32, %5 : i32
    %c0_i32_2 = arith.constant 0 : i32
    return %3, %6 : i32, i32
  }
  func.func @transform_2(%arg0: i32, %arg1: i32) -> (i32, i32) {
    %c0_i32 = arith.constant 0 : i32
    %0 = arith.cmpi eq, %arg0, %c0_i32 : i32
    %c3_i32 = arith.constant 3 : i32
    %1 = arith.addi %c3_i32, %arg1 : i32
    %c3_i32_0 = arith.constant 3 : i32
    %2 = arith.cmpi sle, %arg0, %c3_i32_0 : i32
    %c1_i32 = arith.constant 1 : i32
    %3 = arith.subi %arg0, %c1_i32 : i32
    %c5_i32 = arith.constant 5 : i32
    %4 = arith.addi %c5_i32, %arg1 : i32
    %5 = arith.select %2, %3, %4 : i32
    %6 = arith.select %0, %1, %5 : i32
    %c0_i32_1 = arith.constant 0 : i32
    %c0_i32_2 = arith.constant 0 : i32
    return %c0_i32_1, %6 : i32, i32
  }
  func.func @transform_3(%arg0: i32, %arg1: i32) -> (i32, i32) {
    %c0_i32 = arith.constant 0 : i32
    %0 = arith.cmpi eq, %arg0, %c0_i32 : i32
    %c3_i32 = arith.constant 3 : i32
    %1 = arith.addi %c3_i32, %arg1 : i32
    %c3_i32_0 = arith.constant 3 : i32
    %2 = arith.cmpi sle, %arg0, %c3_i32_0 : i32
    %c1_i32 = arith.constant 1 : i32
    %3 = arith.subi %arg0, %c1_i32 : i32
    %c5_i32 = arith.constant 5 : i32
    %4 = arith.addi %c5_i32, %arg1 : i32
    %5 = arith.select %2, %3, %4 : i32
    %6 = arith.select %0, %1, %5 : i32
    %c0_i32_1 = arith.constant 0 : i32
    %c0_i32_2 = arith.constant 0 : i32
    return %c0_i32_1, %6 : i32, i32
  }
}

</mosaic_0001>

<llo_original>
// kernel: aaa_block_forward.1
$region0: #{aaa_block_forward.1}
  #allocation0 [shape = 'u32[]', space=smem, size = 0x4, offset = 0x4, fixed_abs, tag = 'smem constant byte address 0x4 - core index']
  #allocation1 [shape = 'u32[72,128]{1,0:T(1,128)}', space=vmem, size = 0x9000, scoped, tag = 'internal scratch']
  #allocation2 [shape = 'f32[32,128]{1,0:T(8,128)}', space=vmem, size = 0x4000, scoped, tag = 'scratch operand']
  %s0 = inlined_call_operand.vmem [shape: bf16[32,256], index: 0, kind: input, shape index: {}]
  %s1 = inlined_call_operand.vmem [shape: bf16[256,384], index: 1, kind: input, shape index: {}]
  %s2 = inlined_call_operand.vmem [shape: f32[2,896], index: 2, kind: input, shape index: {}]
  %s3 = inlined_call_operand.hbm [shape: f32[16,896], index: 3, kind: output, shape index: {}]
  %s4 = sld [smem:[#allocation0]]
  $region147: #{aaa_block_forward.1} parent=0
    _
  %s6 = ssub.s32 1, %s4
  %s7 = scalar_select 0, %s6, %s4
  $region1: #{aaa_block_forward.1} parent=0
    #allocation3 [shape = 'u8[16384]{0}', space=vmem, size = 0x4000, scoped, tag = 'input window, operand 0']
    #allocation4 [shape = 'u8[65536]{0}', space=vmem, size = 0x10000, scoped, tag = 'input window, operand 1']
    #allocation5 [shape = 'u8[16384]{0}', space=vmem, size = 0x4000, scoped, tag = 'output window, operand 0']
    #allocation6 [shape = 's32[2]{0}', space=sflag, size = 0x8, scoped, tag = 'scoped memory for aaa_block_forward.1']
    %8 = vsyncpa [#allocation6], 0
    %s9 = scalar_lea.sflag [#allocation6], 1
    %10 = vsyncpa %s9, 0
    loop: start=0, step=1, limit=12
    $region2: #{aaa_block_forward.1} parent=1 // loop_pre_header
      _
    $region3: #{aaa_block_forward.1} parent=1 // loop_header
      %s12 = sphi 0, %s16
      %p13 = scmp.ge.s32.totalorder %s12, 12
      %s19 = sphi 0, %s31
      %s20 = sphi 0, %s27
      %s21 = sphi 0, %s19
      %s22 = sphi 0, %s20
      %s23 = sphi 0, %s21
      %s24 = sphi 0, %s22
      %s34 = sphi 0, %s36
      %s37 = sphi 0, %s34
      %s38 = sphi 0, %s37
      %s54 = sphi 0, %s38
      %s82 = sphi 0, %s84
      %s85 = sphi 0, %s82
      %s86 = sphi 0, %s85
      %s102 = sphi 0, %s86
      %s122 = sphi 0, %s124
      %s125 = sphi 0, %s122
      %s126 = sphi 0, %s125
      %s142 = sphi 0, %s126
      %s162 = sphi 0, %s164
      %s165 = sphi 0, %s162
      %s166 = sphi 0, %s165
      %s182 = sphi 0, %s166
    $region4: #{aaa_block_forward.1} parent=1 // loop_header_branch
      %15 = sbr.rel (%p13) target = $region8
    $region5: #{aaa_block_forward.1} parent=1 // loop_body
      %s17 = ssub.s32 %s12, 1
      %s18 = ssub.s32 %s12, 2
      %s25 = sadd.s32 1, %s20
      %p26 = scmp.ge.s32.totalorder %s25, 2
      %s27 = scalar_select %p26, 0, %s25
      %s28 = sadd.s32 1, %s19
      %s29 = scalar_select %p26, %s28, %s19
      %p30 = scmp.ge.s32.totalorder %s29, 5
      %s31 = scalar_select %p30, 0, %s29
      %s32 = ssub.s32 %s20, %s27
      %p33 = scmp.eq.s32.totalorder %s32, 0
      %s35 = sadd.s32 %s34, 1
      %s36 = scalar_select %p33, %s34, %s35
      %p39 = pneg %p33
      %p40 = scmp.eq.s32.totalorder %s12, 9
      %p41 = por %p39, %p40
      %p42 = scmp.ne.s32.totalorder %s34, %s37
      %p43 = scmp.eq.s32.totalorder %s12, 0
      %p44 = por %p42, %p43
      %p45 = scmp.ne.s32.totalorder %s34, %s37
      %p46 = scmp.eq.s32.totalorder %s17, 9
      %p47 = por %p45, %p46
      %p48 = scmp.ne.s32.totalorder %s37, %s38
      %p49 = scmp.eq.s32.totalorder %s17, 0
      %p50 = por %p48, %p49
      %p51 = scmp.ne.s32.totalorder %s37, %s38
      %p52 = scmp.eq.s32.totalorder %s18, 9
      %p53 = por %p51, %p52
      %p55 = scmp.ne.s32.totalorder %s38, %s54
      %p56 = scmp.eq.s32.totalorder %s18, 0
      %p57 = por %p55, %p56
      %p58 = scmp.ge.s32.totalorder %s19, 1
      %p59 = scmp.le.s32.totalorder %s19, 3
      %p60 = pnand %p58, %p59
      %p61 = pneg %p60
      %s62 = scalar_select %p61, %s20, 0
      %s63 = ssub.s32 %s19, 1
      %p64 = scmp.gt.s32.totalorder %s63, 0
      %s65 = scalar_select %p64, %s63, 0
      %p66 = scmp.lt.s32.totalorder %s65, 2
      %s67 = scalar_select %p66, %s65, 2
      %p68 = scmp.ge.s32.totalorder %s31, 1
      %p69 = scmp.le.s32.totalorder %s31, 3
      %p70 = pnand %p68, %p69
      %p71 = pneg %p70
      %s72 = scalar_select %p71, %s27, 0
      %s73 = ssub.s32 %s31, 1
      %p74 = scmp.gt.s32.totalorder %s73, 0
      %s75 = scalar_select %p74, %s73, 0
      %p76 = scmp.lt.s32.totalorder %s75, 2
      %s77 = scalar_select %p76, %s75, 2
      %s78 = ssub.s32 %s62, %s72
      %s79 = ssub.s32 %s67, %s77
      %s80 = sor.u32 %s78, %s79
      %p81 = scmp.eq.s32.totalorder %s80, 0
      %s83 = sadd.s32 %s82, 1
      %s84 = scalar_select %p81, %s82, %s83
      %p87 = pneg %p81
      %p88 = scmp.eq.s32.totalorder %s12, 9
      %p89 = por %p87, %p88
      %p90 = scmp.ne.s32.totalorder %s82, %s85
      %p91 = scmp.eq.s32.totalorder %s12, 0
      %p92 = por %p90, %p91
      %p93 = scmp.ne.s32.totalorder %s82, %s85
      %p94 = scmp.eq.s32.totalorder %s17, 9
      %p95 = por %p93, %p94
      %p96 = scmp.ne.s32.totalorder %s85, %s86
      %p97 = scmp.eq.s32.totalorder %s17, 0
      %p98 = por %p96, %p97
      %p99 = scmp.ne.s32.totalorder %s85, %s86
      %p100 = scmp.eq.s32.totalorder %s18, 9
      %p101 = por %p99, %p100
      %p103 = scmp.ne.s32.totalorder %s86, %s102
      %p104 = scmp.eq.s32.totalorder %s18, 0
      %p105 = por %p103, %p104
      %p106 = scmp.eq.s32.totalorder %s19, 0
      %s107 = sadd.s32 %s20, 3
      %p108 = scmp.le.s32.totalorder %s19, 3
      %s109 = ssub.s32 %s19, 1
      %s110 = sadd.s32 %s20, 5
      %s111 = scalar_select %p108, %s109, %s110
      %s112 = scalar_select %p106, %s107, %s111
      %p113 = scmp.eq.s32.totalorder %s31, 0
      %s114 = sadd.s32 %s27, 3
      %p115 = scmp.le.s32.totalorder %s31, 3
      %s116 = ssub.s32 %s31, 1
      %s117 = sadd.s32 %s27, 5
      %s118 = scalar_select %p115, %s116, %s117
      %s119 = scalar_select %p113, %s114, %s118
      %s120 = ssub.s32 %s112, %s119
      %p121 = scmp.eq.s32.totalorder %s120, 0
      %s123 = sadd.s32 %s122, 1
      %s124 = scalar_select %p121, %s122, %s123
      %p127 = pneg %p121
      %p128 = scmp.eq.s32.totalorder %s12, 9
      %p129 = por %p127, %p128
      %p130 = scmp.ne.s32.totalorder %s122, %s125
      %p131 = scmp.eq.s32.totalorder %s12, 0
      %p132 = por %p130, %p131
      %p133 = scmp.ne.s32.totalorder %s122, %s125
      %p134 = scmp.eq.s32.totalorder %s17, 9
      %p135 = por %p133, %p134
      %p136 = scmp.ne.s32.totalorder %s125, %s126
      %p137 = scmp.eq.s32.totalorder %s17, 0
      %p138 = por %p136, %p137
      %p139 = scmp.ne.s32.totalorder %s125, %s126
      %p140 = scmp.eq.s32.totalorder %s18, 9
      %p141 = por %p139, %p140
      %p143 = scmp.ne.s32.totalorder %s126, %s142
      %p144 = scmp.eq.s32.totalorder %s18, 0
      %p145 = por %p143, %p144
      %p146 = scmp.eq.s32.totalorder %s19, 0
      %s147 = sadd.s32 %s20, 3
      %p148 = scmp.le.s32.totalorder %s19, 3
      %s149 = ssub.s32 %s19, 1
      %s150 = sadd.s32 %s20, 5
      %s151 = scalar_select %p148, %s149, %s150
      %s152 = scalar_select %p146, %s147, %s151
      %p153 = scmp.eq.s32.totalorder %s31, 0
      %s154 = sadd.s32 %s27, 3
      %p155 = scmp.le.s32.totalorder %s31, 3
      %s156 = ssub.s32 %s31, 1
      %s157 = sadd.s32 %s27, 5
      %s158 = scalar_select %p155, %s156, %s157
      %s159 = scalar_select %p153, %s154, %s158
      %s160 = ssub.s32 %s152, %s159
      %p161 = scmp.eq.s32.totalorder %s160, 0
      %s163 = sadd.s32 %s162, 1
      %s164 = scalar_select %p161, %s162, %s163
      %p167 = pneg %p161
      %p168 = scmp.eq.s32.totalorder %s12, 9
      %p169 = por %p167, %p168
      %p170 = scmp.ne.s32.totalorder %s162, %s165
      %p171 = scmp.eq.s32.totalorder %s12, 0
      %p172 = por %p170, %p171
      %p173 = scmp.ne.s32.totalorder %s162, %s165
      %p174 = scmp.eq.s32.totalorder %s17, 9
      %p175 = por %p173, %p174
      %p176 = scmp.ne.s32.totalorder %s165, %s166
      %p177 = scmp.eq.s32.totalorder %s17, 0
      %p178 = por %p176, %p177
      %p179 = scmp.ne.s32.totalorder %s165, %s166
      %p180 = scmp.eq.s32.totalorder %s18, 9
      %p181 = por %p179, %p180
      %p183 = scmp.ne.s32.totalorder %s166, %s182
      %p184 = scmp.eq.s32.totalorder %s18, 0
      %p185 = por %p183, %p184
      %p186 = scmp.le.s32.totalorder 1, %s12
      %p187 = scmp.lt.s32.totalorder %s12, 11
      %p188 = pnand %p186, %p187
      %p189 = pneg %p188
      // Predicated region
      $region9: #{aaa_block_forward.1} parent=5 // pred_check
        _
      $region10: #{aaa_block_forward.1} parent=5 // pred_check_branch
        %191 = sbr.rel (%p188) target = $region12
      $region11: #{aaa_block_forward.1} parent=5 // pred_region
        %s192 = ssub.s32 %s12, 1
      $region12: #{aaa_block_forward.1} parent=5 // pred_fallthru
        _
      %p193 = scmp.lt.s32.totalorder %s12, 10
      // Predicated region
      $region13: #{aaa_block_forward.1} parent=5 // pred_check
        %p194 = pneg %p193
      $region14: #{aaa_block_forward.1} parent=5 // pred_check_branch
        %196 = sbr.rel (%p194) target = $region16
      $region15: #{aaa_block_forward.1} parent=5 // pred_region
        // Predicated region
        $region17: #{aaa_block_forward.1} parent=15 // pred_check
          %p197 = pneg %p44
        $region18: #{aaa_block_forward.1} parent=15 // pred_check_branch
          %199 = sbr.rel (%p197) target = $region20
        $region19: #{aaa_block_forward.1} parent=15 // pred_region
          %s200 = sand.u32 %s34, 1
          %s201 = sand.u32 %s34, 1
          %s202 = smul.addr %s201, 16
          %s203 = scalar_lea.vmem [#allocation3], %s202
          %s204 = smul.addr %s20, 4
          %s205 = scalar_lea.vmem %s0, %s204
          // Predicated region
          $region21: #{aaa_block_forward.1} parent=19 // pred_check
            _
          $region22: #{aaa_block_forward.1} parent=19 // pred_check_branch
            %207 = sbr.rel (0) target = $region24
          $region23: #{aaa_block_forward.1} parent=19 // pred_region
            // Predicated region
            $region25: #{aaa_block_forward.1} parent=23 // pred_check
              _
            $region26: #{aaa_block_forward.1} parent=23 // pred_check_branch
              %209 = sbr.rel target = $region28
            $region27: #{aaa_block_forward.1} parent=23 // pred_region
              // Predicated region
              $region40: #{aaa_block_forward.1} parent=27 // pred_check
                _
              $region41: #{aaa_block_forward.1} parent=27 // pred_check_branch
                %231 = sbr.rel (0) target = $region43
              $region42: #{aaa_block_forward.1} parent=27 // pred_region
                loop: start=0, step=1, limit=1
                $region44: #{aaa_block_forward.1} parent=42 // loop_pre_header
                  _
                $region45: #{aaa_block_forward.1} parent=42 // loop_header
                  %s233 = sphi 0, %s237
                  %p234 = scmp.ge.s32.totalorder %s233, 1
                  %s238 = sphi %s205, %s205
                  %s239 = sphi %s203, %s203
                $region46: #{aaa_block_forward.1} parent=42 // loop_header_branch
                  %236 = sbr.rel (%p234) target = $region50
                $region47: #{aaa_block_forward.1} parent=42 // loop_body
                  _
                $region48: #{aaa_block_forward.1} parent=42 // loop_footer
                  %s237 = sadd.s32 1, %s233
                $region49: #{aaa_block_forward.1} parent=42 // loop_footer_branch
                  %232 = sbr.rel target = $region45
                $region50: #{aaa_block_forward.1} parent=42 // loop_exit
                  _
                %s241 = ssub.s32 16, 1
                loop: start=0, step=1, limit=1
                $region51: #{aaa_block_forward.1} parent=42 // loop_pre_header
                  _
                $region52: #{aaa_block_forward.1} parent=42 // loop_header
                  %s243 = sphi 0, %s247
                  %p244 = scmp.ge.s32.totalorder %s243, 1
                  %s248 = sphi %s205, %s205
                  %s249 = sphi %s203, %s203
                $region53: #{aaa_block_forward.1} parent=42 // loop_header_branch
                  %246 = sbr.rel (%p244) target = $region57
                $region54: #{aaa_block_forward.1} parent=42 // loop_body
                  %v250 = vld [vmem:[%s248] sm:%s241]
                  %251 = vst [vmem:[%s249] sm:%s241] %v250
                  %v252 = vld [vmem:[%s248 + $0x8] sm:%s241]
                  %253 = vst [vmem:[%s249 + $0x4] sm:%s241] %v252
                  %v254 = vld [vmem:[%s248 + $0x10] sm:%s241]
                  %255 = vst [vmem:[%s249 + $0x8] sm:%s241] %v254
                  %v256 = vld [vmem:[%s248 + $0x18] sm:%s241]
                  %257 = vst [vmem:[%s249 + $0xc] sm:%s241] %v256
                $region55: #{aaa_block_forward.1} parent=42 // loop_footer
                  %s247 = sadd.s32 1, %s243
                $region56: #{aaa_block_forward.1} parent=42 // loop_footer_branch
                  %242 = sbr.rel target = $region52
                $region57: #{aaa_block_forward.1} parent=42 // loop_exit
                  _
              $region43: #{aaa_block_forward.1} parent=27 // pred_fallthru
                _
            $region28: #{aaa_block_forward.1} parent=23 // pred_fallthru
              _
            // Predicated region
            $region29: #{aaa_block_forward.1} parent=23 // pred_check
              _
            $region30: #{aaa_block_forward.1} parent=23 // pred_check_branch
              %211 = sbr.rel (0) target = $region32
            $region31: #{aaa_block_forward.1} parent=23 // pred_region
              %s213 = ssub.s32 16, 1
              loop: start=0, step=1, limit=1
              $region33: #{aaa_block_forward.1} parent=31 // loop_pre_header
                _
              $region34: #{aaa_block_forward.1} parent=31 // loop_header
                %s215 = sphi 0, %s219
                %p216 = scmp.ge.s32.totalorder %s215, 1
                %s220 = sphi %s205, %s205
                %s221 = sphi %s203, %s203
              $region35: #{aaa_block_forward.1} parent=31 // loop_header_branch
                %218 = sbr.rel (%p216) target = $region39
              $region36: #{aaa_block_forward.1} parent=31 // loop_body
                %v222 = vld [vmem:[%s220] sm:%s213]
                %223 = vst [vmem:[%s221] sm:%s213] %v222
                %v224 = vld [vmem:[%s220 + $0x8] sm:%s213]
                %225 = vst [vmem:[%s221 + $0x4] sm:%s213] %v224
                %v226 = vld [vmem:[%s220 + $0x10] sm:%s213]
                %227 = vst [vmem:[%s221 + $0x8] sm:%s213] %v226
                %v228 = vld [vmem:[%s220 + $0x18] sm:%s213]
                %229 = vst [vmem:[%s221 + $0xc] sm:%s213] %v228
              $region37: #{aaa_block_forward.1} parent=31 // loop_footer
                %s219 = sadd.s32 1, %s215
              $region38: #{aaa_block_forward.1} parent=31 // loop_footer_branch
                %214 = sbr.rel target = $region34
              $region39: #{aaa_block_forward.1} parent=31 // loop_exit
                _
            $region32: #{aaa_block_forward.1} parent=23 // pred_fallthru
              _
          $region24: #{aaa_block_forward.1} parent=19 // pred_fallthru
            _
          %258 = vnop
        $region20: #{aaa_block_forward.1} parent=15 // pred_fallthru
          _
        // Predicated region
        $region58: #{aaa_block_forward.1} parent=15 // pred_check
          %p259 = pneg %p92
        $region59: #{aaa_block_forward.1} parent=15 // pred_check_branch
          %261 = sbr.rel (%p259) target = $region61
        $region60: #{aaa_block_forward.1} parent=15 // pred_region
          %s262 = sand.u32 %s82, 1
          %s263 = sand.u32 %s82, 1
          %s264 = smul.addr %s263, 64
          %s265 = scalar_lea.vmem [#allocation4], %s264
          %p266 = scmp.ge.s32.totalorder %s19, 1
          %p267 = scmp.le.s32.totalorder %s19, 3
          %p268 = pnand %p266, %p267
          %p269 = pneg %p268
          %s270 = scalar_select %p269, %s20, 0
          %s271 = ssub.s32 %s19, 1
          %p272 = scmp.gt.s32.totalorder %s271, 0
          %s273 = scalar_select %p272, %s271, 0
          %p274 = scmp.lt.s32.totalorder %s273, 2
          %s275 = scalar_select %p274, %s273, 2
          %s276 = smul.u32 16, %s270
          %s277 = smul.addr %s276, 3
          %s278 = sadd.s32 %s275, %s277
          %s279 = smul.addr %s278, 4
          %s280 = scalar_lea.vmem %s1, %s279
          // Predicated region
          $region62: #{aaa_block_forward.1} parent=60 // pred_check
            _
          $region63: #{aaa_block_forward.1} parent=60 // pred_check_branch
            %282 = sbr.rel (0) target = $region65
          $region64: #{aaa_block_forward.1} parent=60 // pred_region
            // Predicated region
            $region66: #{aaa_block_forward.1} parent=64 // pred_check
              _
            $region67: #{aaa_block_forward.1} parent=64 // pred_check_branch
              %284 = sbr.rel target = $region69
            $region68: #{aaa_block_forward.1} parent=64 // pred_region
              // Predicated region
              $region81: #{aaa_block_forward.1} parent=68 // pred_check
                _
              $region82: #{aaa_block_forward.1} parent=68 // pred_check_branch
                %330 = sbr.rel (0) target = $region84
              $region83: #{aaa_block_forward.1} parent=68 // pred_region
                loop: start=0, step=1, limit=1
                $region85: #{aaa_block_forward.1} parent=83 // loop_pre_header
                  _
                $region86: #{aaa_block_forward.1} parent=83 // loop_header
                  %s332 = sphi 0, %s336
                  %p333 = scmp.ge.s32.totalorder %s332, 1
                  %s337 = sphi %s280, %s280
                  %s338 = sphi %s265, %s265
                $region87: #{aaa_block_forward.1} parent=83 // loop_header_branch
                  %335 = sbr.rel (%p333) target = $region91
                $region88: #{aaa_block_forward.1} parent=83 // loop_body
                  _
                $region89: #{aaa_block_forward.1} parent=83 // loop_footer
                  %s336 = sadd.s32 1, %s332
                $region90: #{aaa_block_forward.1} parent=83 // loop_footer_branch
                  %331 = sbr.rel target = $region86
                $region91: #{aaa_block_forward.1} parent=83 // loop_exit
                  _
                %s340 = ssub.s32 16, 1
                loop: start=0, step=1, limit=1
                $region92: #{aaa_block_forward.1} parent=83 // loop_pre_header
                  _
                $region93: #{aaa_block_forward.1} parent=83 // loop_header
                  %s342 = sphi 0, %s346
                  %p343 = scmp.ge.s32.totalorder %s342, 1
                  %s347 = sphi %s280, %s280
                  %s348 = sphi %s265, %s265
                $region94: #{aaa_block_forward.1} parent=83 // loop_header_branch
                  %345 = sbr.rel (%p343) target = $region98
                $region95: #{aaa_block_forward.1} parent=83 // loop_body
                  %v349 = vld [vmem:[%s347] sm:%s340]
                  %350 = vst [vmem:[%s348] sm:%s340] %v349
                  %v351 = vld [vmem:[%s347 + $0xc] sm:%s340]
                  %352 = vst [vmem:[%s348 + $0x4] sm:%s340] %v351
                  %v353 = vld [vmem:[%s347 + $0x18] sm:%s340]
                  %354 = vst [vmem:[%s348 + $0x8] sm:%s340] %v353
                  %v355 = vld [vmem:[%s347 + $0x24] sm:%s340]
                  %356 = vst [vmem:[%s348 + $0xc] sm:%s340] %v355
                  %v357 = vld [vmem:[%s347 + $0x30] sm:%s340]
                  %358 = vst [vmem:[%s348 + $0x10] sm:%s340] %v357
                  %v359 = vld [vmem:[%s347 + $0x3c] sm:%s340]
                  %360 = vst [vmem:[%s348 + $0x14] sm:%s340] %v359
                  %v361 = vld [vmem:[%s347 + $0x48] sm:%s340]
                  %362 = vst [vmem:[%s348 + $0x18] sm:%s340] %v361
                  %v363 = vld [vmem:[%s347 + $0x54] sm:%s340]
                  %364 = vst [vmem:[%s348 + $0x1c] sm:%s340] %v363
                  %v365 = vld [vmem:[%s347 + $0x60] sm:%s340]
                  %366 = vst [vmem:[%s348 + $0x20] sm:%s340] %v365
                  %v367 = vld [vmem:[%s347 + $0x6c] sm:%s340]
                  %368 = vst [vmem:[%s348 + $0x24] sm:%s340] %v367
                  %v369 = vld [vmem:[%s347 + $0x78] sm:%s340]
                  %370 = vst [vmem:[%s348 + $0x28] sm:%s340] %v369
                  %v371 = vld [vmem:[%s347 + $0x84] sm:%s340]
                  %372 = vst [vmem:[%s348 + $0x2c] sm:%s340] %v371
                  %v373 = vld [vmem:[%s347 + $0x90] sm:%s340]
                  %374 = vst [vmem:[%s348 + $0x30] sm:%s340] %v373
                  %v375 = vld [vmem:[%s347 + $0x9c] sm:%s340]
                  %376 = vst [vmem:[%s348 + $0x34] sm:%s340] %v375
                  %v377 = vld [vmem:[%s347 + $0xa8] sm:%s340]
                  %378 = vst [vmem:[%s348 + $0x38] sm:%s340] %v377
                  %v379 = vld [vmem:[%s347 + $0xb4] sm:%s340]
                  %380 = vst [vmem:[%s348 + $0x3c] sm:%s340] %v379
                $region96: #{aaa_block_forward.1} parent=83 // loop_footer
                  %s346 = sadd.s32 1, %s342
                $region97: #{aaa_block_forward.1} parent=83 // loop_footer_branch
                  %341 = sbr.rel target = $region93
                $region98: #{aaa_block_forward.1} parent=83 // loop_exit
                  _
              $region84: #{aaa_block_forward.1} parent=68 // pred_fallthru
                _
            $region69: #{aaa_block_forward.1} parent=64 // pred_fallthru
              _
            // Predicated region
            $region70: #{aaa_block_forward.1} parent=64 // pred_check
              _
            $region71: #{aaa_block_forward.1} parent=64 // pred_check_branch
              %286 = sbr.rel (0) target = $region73
            $region72: #{aaa_block_forward.1} parent=64 // pred_region
              %s288 = ssub.s32 16, 1
              loop: start=0, step=1, limit=1
              $region74: #{aaa_block_forward.1} parent=72 // loop_pre_header
                _
              $region75: #{aaa_block_forward.1} parent=72 // loop_header
                %s290 = sphi 0, %s294
                %p291 = scmp.ge.s32.totalorder %s290, 1
                %s295 = sphi %s280, %s280
                %s296 = sphi %s265, %s265
              $region76: #{aaa_block_forward.1} parent=72 // loop_header_branch
                %293 = sbr.rel (%p291) target = $region80
              $region77: #{aaa_block_forward.1} parent=72 // loop_body
                %v297 = vld [vmem:[%s295] sm:%s288]
                %298 = vst [vmem:[%s296] sm:%s288] %v297
                %v299 = vld [vmem:[%s295 + $0xc] sm:%s288]
                %300 = vst [vmem:[%s296 + $0x4] sm:%s288] %v299
                %v301 = vld [vmem:[%s295 + $0x18] sm:%s288]
                %302 = vst [vmem:[%s296 + $0x8] sm:%s288] %v301
                %v303 = vld [vmem:[%s295 + $0x24] sm:%s288]
                %304 = vst [vmem:[%s296 + $0xc] sm:%s288] %v303
                %v305 = vld [vmem:[%s295 + $0x30] sm:%s288]
                %306 = vst [vmem:[%s296 + $0x10] sm:%s288] %v305
                %v307 = vld [vmem:[%s295 + $0x3c] sm:%s288]
                %308 = vst [vmem:[%s296 + $0x14] sm:%s288] %v307
                %v309 = vld [vmem:[%s295 + $0x48] sm:%s288]
                %310 = vst [vmem:[%s296 + $0x18] sm:%s288] %v309
                %v311 = vld [vmem:[%s295 + $0x54] sm:%s288]
                %312 = vst [vmem:[%s296 + $0x1c] sm:%s288] %v311
                %v313 = vld [vmem:[%s295 + $0x60] sm:%s288]
                %314 = vst [vmem:[%s296 + $0x20] sm:%s288] %v313
                %v315 = vld [vmem:[%s295 + $0x6c] sm:%s288]
                %316 = vst [vmem:[%s296 + $0x24] sm:%s288] %v315
                %v317 = vld [vmem:[%s295 + $0x78] sm:%s288]
                %318 = vst [vmem:[%s296 + $0x28] sm:%s288] %v317
                %v319 = vld [vmem:[%s295 + $0x84] sm:%s288]
                %320 = vst [vmem:[%s296 + $0x2c] sm:%s288] %v319
                %v321 = vld [vmem:[%s295 + $0x90] sm:%s288]
                %322 = vst [vmem:[%s296 + $0x30] sm:%s288] %v321
                %v323 = vld [vmem:[%s295 + $0x9c] sm:%s288]
                %324 = vst [vmem:[%s296 + $0x34] sm:%s288] %v323
                %v325 = vld [vmem:[%s295 + $0xa8] sm:%s288]
                %326 = vst [vmem:[%s296 + $0x38] sm:%s288] %v325
                %v327 = vld [vmem:[%s295 + $0xb4] sm:%s288]
                %328 = vst [vmem:[%s296 + $0x3c] sm:%s288] %v327
              $region78: #{aaa_block_forward.1} parent=72 // loop_footer
                %s294 = sadd.s32 1, %s290
              $region79: #{aaa_block_forward.1} parent=72 // loop_footer_branch
                %289 = sbr.rel target = $region75
              $region80: #{aaa_block_forward.1} parent=72 // loop_exit
                _
            $region73: #{aaa_block_forward.1} parent=64 // pred_fallthru
              _
          $region65: #{aaa_block_forward.1} parent=60 // pred_fallthru
            _
          %381 = vnop
        $region61: #{aaa_block_forward.1} parent=15 // pred_fallthru
          _
        // Predicated region
        $region99: #{aaa_block_forward.1} parent=15 // pred_check
          %p382 = pneg %p132
        $region100: #{aaa_block_forward.1} parent=15 // pred_check_branch
          %384 = sbr.rel (%p382) target = $region102
        $region101: #{aaa_block_forward.1} parent=15 // pred_region
          %p385 = scmp.eq.s32.totalorder %s19, 0
          %s386 = sadd.s32 %s20, 3
          %p387 = scmp.le.s32.totalorder %s19, 3
          %s388 = ssub.s32 %s19, 1
          %s389 = sadd.s32 %s20, 5
          %s390 = scalar_select %p387, %s388, %s389
          %s391 = scalar_select %p385, %s386, %s390
          %p392 = scmp.lt.s32.totalorder %s391, 6
          %s393 = scalar_select %p392, %s391, 6
          %s394 = smul.addr %s393, 2
          %s395 = scalar_lea.vmem %s2, %s394
          %p396 = scmp.eq.s32.totalorder %s19, 0
          %s397 = sadd.s32 %s20, 3
          %p398 = scmp.le.s32.totalorder %s19, 3
          %s399 = ssub.s32 %s19, 1
          %s400 = sadd.s32 %s20, 5
          %s401 = scalar_select %p398, %s399, %s400
          %s402 = scalar_select %p396, %s397, %s401
        $region102: #{aaa_block_forward.1} parent=15 // pred_fallthru
          _
      $region16: #{aaa_block_forward.1} parent=5 // pred_fallthru
        _
      %p403 = scmp.le.s32.totalorder 1, %s12
      %p404 = scmp.lt.s32.totalorder %s12, 11
      %p405 = pnand %p403, %p404
      %p406 = pneg %p405
      // Predicated region
      $region103: #{aaa_block_forward.1} parent=5 // pred_check
        _
      $region104: #{aaa_block_forward.1} parent=5 // pred_check_branch
        %408 = sbr.rel (%p405) target = $region106
      $region105: #{aaa_block_forward.1} parent=5 // pred_region
        %s409 = ssub.s32 %s12, 1
        %s410 = sand.u32 %s37, 1
        %s411 = sand.u32 %s37, 1
        %s412 = smul.addr %s411, 16
        %s413 = scalar_lea.vmem [#allocation3], %s412
        // Predicated region
        $region107: #{aaa_block_forward.1} parent=105 // pred_check
          %p414 = pneg %p50
        $region108: #{aaa_block_forward.1} parent=105 // pred_check_branch
          %416 = sbr.rel (%p414) target = $region110
        $region109: #{aaa_block_forward.1} parent=105 // pred_region
          _
        $region110: #{aaa_block_forward.1} parent=105 // pred_fallthru
          _
        %s417 = sand.u32 %s85, 1
        %s418 = sand.u32 %s85, 1
        %s419 = smul.addr %s418, 64
        %s420 = scalar_lea.vmem [#allocation4], %s419
        // Predicated region
        $region111: #{aaa_block_forward.1} parent=105 // pred_check
          %p421 = pneg %p98
        $region112: #{aaa_block_forward.1} parent=105 // pred_check_branch
          %423 = sbr.rel (%p421) target = $region114
        $region113: #{aaa_block_forward.1} parent=105 // pred_region
          _
        $region114: #{aaa_block_forward.1} parent=105 // pred_fallthru
          _
        %s424 = sand.u32 %s37, 1
        %s425 = sand.u32 %s37, 1
        %s426 = smul.addr %s425, 16
        %s427 = scalar_lea.vmem [#allocation3], %s426
        %p428 = pneg %p50
        %p429 = pneg %p47
        %s430 = sand.u32 %s85, 1
        %s431 = sand.u32 %s85, 1
        %s432 = smul.addr %s431, 64
        %s433 = scalar_lea.vmem [#allocation4], %s432
        %p434 = pneg %p98
        %p435 = pneg %p95
        %p436 = scmp.eq.s32.totalorder %s21, 0
        %s437 = sadd.s32 %s22, 3
        %p438 = scmp.le.s32.totalorder %s21, 3
        %s439 = ssub.s32 %s21, 1
        %s440 = sadd.s32 %s22, 5
        %s441 = scalar_select %p438, %s439, %s440
        %s442 = scalar_select %p436, %s437, %s441
        %p443 = scmp.lt.s32.totalorder %s442, 6
        %s444 = scalar_select %p443, %s442, 6
        %s445 = smul.addr %s444, 2
        %s446 = scalar_lea.vmem %s2, %s445
        %p447 = pneg %p138
        %p448 = pneg %p135
        %p449 = pneg %p178
        %p450 = pneg %p175
        %s451 = sand.u32 %s165, 1
        %s452 = scalar_lea.sflag [#allocation6], %s451
        %s453 = sand.u32 %s165, 1
        %s454 = smul.addr %s453, 16
        %s455 = scalar_lea.vmem [#allocation5], %s454
        %p456 = scmp.ge.s32.totalorder %s21, 1
        %p457 = scmp.le.s32.totalorder %s21, 3
        %p458 = pnand %p456, %p457
        %p459 = pneg %p458
        %s460 = scalar_select %p459, %s22, 0
        %s461 = ssub.s32 %s21, 1
        %p462 = scmp.gt.s32.totalorder %s461, 0
        %s463 = scalar_select %p462, %s461, 0
        %p464 = scmp.lt.s32.totalorder %s463, 2
        %s465 = scalar_select %p464, %s463, 2
        %s466 = smul.u32 16, %s460
        %p467 = scmp.eq.s32.totalorder %s21, 0
        %s468 = sadd.s32 %s22, 3
        %p469 = scmp.le.s32.totalorder %s21, 3
        %s470 = ssub.s32 %s21, 1
        %s471 = sadd.s32 %s22, 5
        %s472 = scalar_select %p469, %s470, %s471
        %s473 = scalar_select %p467, %s468, %s472
        %p474 = scmp.lt.s32.totalorder %s473, 6
        %s475 = scalar_select %p474, %s473, 6
        %s476 = smul.addr %s475, 2
        %s477 = scalar_lea.vmem %s2, %s476
        %p478 = scmp.eq.s32.totalorder %s21, 0
        %s479 = sadd.s32 %s22, 3
        %p480 = scmp.le.s32.totalorder %s21, 3
        %s481 = ssub.s32 %s21, 1
        %s482 = sadd.s32 %s22, 5
        %s483 = scalar_select %p480, %s481, %s482
        %s484 = scalar_select %p478, %s479, %s483
        %p485 = scmp.eq.s32.totalorder %s21, 0
        %s486 = sadd.s32 %s22, 3
        %p487 = scmp.le.s32.totalorder %s21, 3
        %s488 = ssub.s32 %s21, 1
        %s489 = sadd.s32 %s22, 5
        %s490 = scalar_select %p487, %s488, %s489
        %s491 = scalar_select %p485, %s486, %s490
        %p492 = scmp.ge.s32.totalorder %s21, 1
        %p493 = scmp.le.s32.totalorder %s21, 3
        %p494 = pnand %p492, %p493
        %p495 = pneg %p494
        %p496 = scmp.eq.s32.totalorder %s22, 0
        %p497 = pnand %p495, %p496
        %p498 = pneg %p497
        // Predicated region
        $region115: #{aaa_block_forward.1} parent=105 // pred_check
          _
        $region116: #{aaa_block_forward.1} parent=105 // pred_check_branch
          %500 = sbr.rel (%p497) target = $region118
        $region117: #{aaa_block_forward.1} parent=105 // pred_region
          %501 = vst [vmem:[#allocation2] sm:$0xff] 0.0
          %502 = vst [vmem:[#allocation2 + $0x8] sm:$0xff] 0.0
          %503 = vst [vmem:[#allocation2 + $0x10] sm:$0xff] 0.0
          %504 = vst [vmem:[#allocation2 + $0x18] sm:$0xff] 0.0
        $region118: #{aaa_block_forward.1} parent=105 // pred_fallthru
          _
        // Predicated region
        $region119: #{aaa_block_forward.1} parent=105 // pred_check
          _
        $region120: #{aaa_block_forward.1} parent=105 // pred_check_branch
          %506 = sbr.rel (%p494) target = $region122
        $region121: #{aaa_block_forward.1} parent=105 // pred_region
          %v507 = vld [vmem:[#allocation2] sm:$0xff]
          %v508 = vld [vmem:[#allocation2 + $0x8] sm:$0xff]
          %v509 = vld [vmem:[#allocation2 + $0x10] sm:$0xff]
          %v510 = vld [vmem:[#allocation2 + $0x18] sm:$0xff]
          %v511 = vld [vmem:[%s413] sm:$0xf]
          %v512 = vld [vmem:[%s413 + $0x4] sm:$0xf]
          %v513 = vld [vmem:[%s413 + $0x8] sm:$0xf]
          %v514 = vld [vmem:[%s413 + $0xc] sm:$0xf]
          %v515 = vld [vmem:[%s420] sm:$0xf]
          %v516 = vld [vmem:[%s420 + $0x4] sm:$0xf]
          %v517 = vld [vmem:[%s420 + $0x8] sm:$0xf]
          %v518 = vld [vmem:[%s420 + $0xc] sm:$0xf]
          %v519 = vld [vmem:[%s420 + $0x10] sm:$0xf]
          %v520 = vld [vmem:[%s420 + $0x14] sm:$0xf]
          %v521 = vld [vmem:[%s420 + $0x18] sm:$0xf]
          %v522 = vld [vmem:[%s420 + $0x1c] sm:$0xf]
          %v523 = vld [vmem:[%s420 + $0x20] sm:$0xf]
          %v524 = vld [vmem:[%s420 + $0x24] sm:$0xf]
          %v525 = vld [vmem:[%s420 + $0x28] sm:$0xf]
          %v526 = vld [vmem:[%s420 + $0x2c] sm:$0xf]
          %v527 = vld [vmem:[%s420 + $0x30] sm:$0xf]
          %v528 = vld [vmem:[%s420 + $0x34] sm:$0xf]
          %v529 = vld [vmem:[%s420 + $0x38] sm:$0xf]
          %v530 = vld [vmem:[%s420 + $0x3c] sm:$0xf]
          %v535 = vunpack.c.l.b16 %v511
          %v536 = vunpack.c.l.b16 %v512
          %v537 = vunpack.c.l.b16 %v513
          %v538 = vunpack.c.l.b16 %v514
          %v539 = vpack.c.b16 %v536, %v535
          %v540 = vpack.c.b16 %v538, %v537
          %v559 = vunpack.c.l.b16 %v515
          %v560 = vunpack.c.l.b16 %v516
          %v561 = vunpack.c.l.b16 %v517
          %v562 = vunpack.c.l.b16 %v518
          %v563 = vunpack.c.l.b16 %v519
          %v564 = vunpack.c.l.b16 %v520
          %v565 = vunpack.c.l.b16 %v521
          %v566 = vunpack.c.l.b16 %v522
          %v567 = vunpack.c.l.b16 %v523
          %v568 = vunpack.c.l.b16 %v524
          %v569 = vunpack.c.l.b16 %v525
          %v570 = vunpack.c.l.b16 %v526
          %v571 = vunpack.c.l.b16 %v527
          %v572 = vunpack.c.l.b16 %v528
          %v573 = vunpack.c.l.b16 %v529
          %v574 = vunpack.c.l.b16 %v530
          %v575 = vpack.c.b16 %v560, %v559
          %v576 = vpack.c.b16 %v562, %v561
          %v577 = vpack.c.b16 %v564, %v563
          %v578 = vpack.c.b16 %v566, %v565
          %v579 = vpack.c.b16 %v568, %v567
          %v580 = vpack.c.b16 %v570, %v569
          %v581 = vpack.c.b16 %v572, %v571
          %v582 = vpack.c.b16 %v574, %v573
          %591 = vmatpush.bf16.msra.mxu0 %v582
          %592 = vmatpush.bf16.msra.mxu0 %v581
          %593 = vmatpush.bf16.msra.mxu0 %v580
          %594 = vmatpush.bf16.msra.mxu0 %v579
          %595 = vmatpush.bf16.msra.mxu0 %v578
          %596 = vmatpush.bf16.msra.mxu0 %v577
          %597 = vmatpush.bf16.msra.mxu0 %v576
          %598 = vmatpush.bf16.msra.mxu0 %v575
          %599 = vmatmul.bf16.gmra.mxu0 %v539
          %v600 = vpop.f32.mrf.mxu0
          %v601 = vadd.f32 0.0, %v600
          %v602 = vpop.f32.mrf.mxu0
          %v603 = vadd.f32 0.0, %v602
          %604 = vmatmul.bf16.gmra.mxu0 %v540
          %v605 = vpop.f32.mrf.mxu0
          %v606 = vadd.f32 0.0, %v605
          %v607 = vpop.f32.mrf.mxu0
          %v608 = vadd.f32 0.0, %v607
          %609 = vdwg.mxu0
          %v610 = vadd.f32 %v507, %v601
          %v611 = vadd.f32 %v508, %v603
          %v612 = vadd.f32 %v509, %v606
          %v613 = vadd.f32 %v510, %v608
          %614 = vst [vmem:[#allocation2] sm:$0xff] %v610
          %615 = vst [vmem:[#allocation2 + $0x8] sm:$0xff] %v611
          %616 = vst [vmem:[#allocation2 + $0x10] sm:$0xff] %v612
          %617 = vst [vmem:[#allocation2 + $0x18] sm:$0xff] %v613
        $region122: #{aaa_block_forward.1} parent=105 // pred_fallthru
          _
        %p618 = scmp.eq.s32.totalorder %s22, 1
        %p619 = pnand %p495, %p618
        %p620 = pneg %p619
        // Predicated region
        $region123: #{aaa_block_forward.1} parent=105 // pred_check
          _
        $region124: #{aaa_block_forward.1} parent=105 // pred_check_branch
          %622 = sbr.rel (%p619) target = $region126
        $region125: #{aaa_block_forward.1} parent=105 // pred_region
          %v623 = vld [vmem:[#allocation2] sm:$0xff]
          %v624 = vld [vmem:[#allocation2 + $0x8] sm:$0xff]
          %v625 = vld [vmem:[#allocation2 + $0x10] sm:$0xff]
          %v626 = vld [vmem:[#allocation2 + $0x18] sm:$0xff]
          %v627 = vmax.f32 %v623, %v625
          %v628 = vmax.f32 %v624, %v626
          %v629 = vld [vmem:[%s477] sm:$0x3]
          %v630 = vadd.f32 %v627, %v628
          %v631 = vrot.slane %v630, 4
          %v632 = vadd.f32 %v630, %v631
          %v633 = vrot.slane %v632, 2
          %v634 = vadd.f32 %v632, %v633
          %v635 = vrot.slane %v634, 1
          %v636 = vadd.f32 %v634, %v635
          %v637 = vmul.f32 %v636, 0.0625
          %v638 = vmul.f32 %v627, %v627
          %v639 = vmul.f32 %v628, %v628
          %v640 = vadd.f32 %v638, %v639
          %v641 = vrot.slane %v640, 4
          %v642 = vadd.f32 %v640, %v641
          %v643 = vrot.slane %v642, 2
          %v644 = vadd.f32 %v642, %v643
          %v645 = vrot.slane %v644, 1
          %v646 = vadd.f32 %v644, %v645
          %v647 = vmul.f32 %v646, 0.0625
          %v648 = vmul.f32 %v637, %v637
          %v649 = vsub.f32 %v647, %v648
          %v650 = vmax.f32 %v649, 0.0
          %v651 = vadd.f32 %v650, 1e-05
          %v652 = vrsqrt.pop %v651
          %v653 = vmul.f32 %v652, %v651
          %v654 = vmul.f32 %v653, %v652
          %v655 = vmul.f32 0.5, %v654
          %v656 = vsub.f32 1.5, %v655
          %v657 = vmul.f32 %v652, %v656
          %vm658 = vweird.f32 %v651
          %vm659 = vweird.f32 %v652
          %vm660 = vmor %vm658, %vm659
          %v661 = vsel %vm660, %v652, %v657
          %v662 = vmul.f32 %v629, %v661
          %v663 = vperm.slane %v662, 0
          %v664 = vmul.f32 %v627, %v663
          %v665 = vmul.f32 %v628, %v663
          %v666 = vmul.f32 %v637, %v662
          %v668 = vrot.slane %v666, 7
          %v670 = vsub.f32 %v629, %v668
          %v671 = vperm.slane %v670, 1
          %v672 = vadd.f32 %v664, %v671
          %v673 = vadd.f32 %v665, %v671
          %674 = vst [vmem:[%s455] sm:$0xff] %v672
          %675 = vst [vmem:[%s455 + $0x8] sm:$0xff] %v673
        $region126: #{aaa_block_forward.1} parent=105 // pred_fallthru
          _
        %p676 = scmp.eq.s32.totalorder %s21, 0
        // Predicated region
        $region127: #{aaa_block_forward.1} parent=105 // pred_check
          %p677 = pneg %p676
        $region128: #{aaa_block_forward.1} parent=105 // pred_check_branch
          %679 = sbr.rel (%p677) target = $region130
        $region129: #{aaa_block_forward.1} parent=105 // pred_region
          %v680 = vld [vmem:[%s413] sm:$0xf]
          %v681 = vld [vmem:[%s413 + $0x4] sm:$0xf]
          %v682 = vld [vmem:[%s413 + $0x8] sm:$0xf]
          %v683 = vld [vmem:[%s413 + $0xc] sm:$0xf]
          %v684 = vunpack.c.l.bf16 %v680
          %v685 = vunpack.c.l.bf16 %v681
          %v686 = vunpack.c.l.bf16 %v682
          %v687 = vunpack.c.l.bf16 %v683
          %v688 = vmin.f32 %v684, %v686
          %v689 = vmin.f32 %v685, %v687
          %v690 = vld [vmem:[%s477] sm:$0x3]
          %v691 = vadd.f32 %v688, %v689
          %v692 = vrot.slane %v691, 4
          %v693 = vadd.f32 %v691, %v692
          %v694 = vrot.slane %v693, 2
          %v695 = vadd.f32 %v693, %v694
          %v696 = vrot.slane %v695, 1
          %v697 = vadd.f32 %v695, %v696
          %v698 = vmul.f32 %v697, 0.0625
          %v699 = vmul.f32 %v688, %v688
          %v700 = vmul.f32 %v689, %v689
          %v701 = vadd.f32 %v699, %v700
          %v702 = vrot.slane %v701, 4
          %v703 = vadd.f32 %v701, %v702
          %v704 = vrot.slane %v703, 2
          %v705 = vadd.f32 %v703, %v704
          %v706 = vrot.slane %v705, 1
          %v707 = vadd.f32 %v705, %v706
          %v708 = vmul.f32 %v707, 0.0625
          %v709 = vmul.f32 %v698, %v698
          %v710 = vsub.f32 %v708, %v709
          %v711 = vmax.f32 %v710, 0.0
          %v712 = vadd.f32 %v711, 1e-05
          %v713 = vrsqrt.pop %v712
          %v714 = vmul.f32 %v713, %v712
          %v715 = vmul.f32 %v714, %v713
          %v716 = vmul.f32 0.5, %v715
          %v717 = vsub.f32 1.5, %v716
          %v718 = vmul.f32 %v713, %v717
          %vm719 = vweird.f32 %v712
          %vm720 = vweird.f32 %v713
          %vm721 = vmor %vm719, %vm720
          %v722 = vsel %vm721, %v713, %v718
          %v723 = vmul.f32 %v690, %v722
          %v724 = vperm.slane %v723, 0
          %v725 = vmul.f32 %v688, %v724
          %v726 = vmul.f32 %v689, %v724
          %v727 = vmul.f32 %v698, %v723
          %v729 = vrot.slane %v727, 7
          %v731 = vsub.f32 %v690, %v729
          %v732 = vperm.slane %v731, 1
          %v733 = vadd.f32 %v725, %v732
          %v734 = vadd.f32 %v726, %v732
          %735 = vst [vmem:[%s455] sm:$0xff] %v733
          %736 = vst [vmem:[%s455 + $0x8] sm:$0xff] %v734
        $region130: #{aaa_block_forward.1} parent=105 // pred_fallthru
          _
        %p737 = scmp.eq.s32.totalorder %s21, 4
        // Predicated region
        $region131: #{aaa_block_forward.1} parent=105 // pred_check
          %p738 = pneg %p737
        $region132: #{aaa_block_forward.1} parent=105 // pred_check_branch
          %740 = sbr.rel (%p738) target = $region134
        $region133: #{aaa_block_forward.1} parent=105 // pred_region
          %v741 = vld [vmem:[%s413] sm:$0xf]
          %v742 = vld [vmem:[%s413 + $0x4] sm:$0xf]
          %v743 = vld [vmem:[%s413 + $0x8] sm:$0xf]
          %v744 = vld [vmem:[%s413 + $0xc] sm:$0xf]
          %v745 = vunpack.c.l.bf16 %v741
          %v746 = vunpack.c.l.bf16 %v742
          %v747 = vunpack.c.l.bf16 %v743
          %v748 = vunpack.c.l.bf16 %v744
          %v749 = vmax.f32 %v745, %v747
          %v750 = vmax.f32 %v746, %v748
          %v751 = vld [vmem:[%s477] sm:$0x3]
          %v752 = vadd.f32 %v749, %v750
          %v753 = vrot.slane %v752, 4
          %v754 = vadd.f32 %v752, %v753
          %v755 = vrot.slane %v754, 2
          %v756 = vadd.f32 %v754, %v755
          %v757 = vrot.slane %v756, 1
          %v758 = vadd.f32 %v756, %v757
          %v759 = vmul.f32 %v758, 0.0625
          %v760 = vmul.f32 %v749, %v749
          %v761 = vmul.f32 %v750, %v750
          %v762 = vadd.f32 %v760, %v761
          %v763 = vrot.slane %v762, 4
          %v764 = vadd.f32 %v762, %v763
          %v765 = vrot.slane %v764, 2
          %v766 = vadd.f32 %v764, %v765
          %v767 = vrot.slane %v766, 1
          %v768 = vadd.f32 %v766, %v767
          %v769 = vmul.f32 %v768, 0.0625
          %v770 = vmul.f32 %v759, %v759
          %v771 = vsub.f32 %v769, %v770
          %v772 = vmax.f32 %v771, 0.0
          %v773 = vadd.f32 %v772, 1e-05
          %v774 = vrsqrt.pop %v773
          %v775 = vmul.f32 %v774, %v773
          %v776 = vmul.f32 %v775, %v774
          %v777 = vmul.f32 0.5, %v776
          %v778 = vsub.f32 1.5, %v777
          %v779 = vmul.f32 %v774, %v778
          %vm780 = vweird.f32 %v773
          %vm781 = vweird.f32 %v774
          %vm782 = vmor %vm780, %vm781
          %v783 = vsel %vm782, %v774, %v779
          %v784 = vmul.f32 %v751, %v783
          %v785 = vperm.slane %v784, 0
          %v786 = vmul.f32 %v749, %v785
          %v787 = vmul.f32 %v750, %v785
          %v788 = vmul.f32 %v759, %v784
          %v790 = vrot.slane %v788, 7
          %v792 = vsub.f32 %v751, %v790
          %v793 = vperm.slane %v792, 1
          %v794 = vadd.f32 %v786, %v793
          %v795 = vadd.f32 %v787, %v793
          %796 = vst [vmem:[%s455] sm:$0xff] %v794
          %797 = vst [vmem:[%s455 + $0x8] sm:$0xff] %v795
        $region134: #{aaa_block_forward.1} parent=105 // pred_fallthru
          _
        %s798 = sand.u32 %s165, 1
        %s799 = scalar_lea.sflag [#allocation6], %s798
        %s800 = sand.u32 %s165, 1
        %s801 = smul.addr %s800, 16
        %s802 = scalar_lea.vmem [#allocation5], %s801
        // Predicated region
        $region135: #{aaa_block_forward.1} parent=105 // pred_check
          %p803 = pneg %p175
        $region136: #{aaa_block_forward.1} parent=105 // pred_check_branch
          %805 = sbr.rel (%p803) target = $region138
        $region137: #{aaa_block_forward.1} parent=105 // pred_region
          %p806 = scmp.eq.s32.totalorder %s21, 0
          %s807 = sadd.s32 %s22, 3
          %p808 = scmp.le.s32.totalorder %s21, 3
          %s809 = ssub.s32 %s21, 1
          %s810 = sadd.s32 %s22, 5
          %s811 = scalar_select %p808, %s809, %s810
          %s812 = scalar_select %p806, %s807, %s811
          %814 = vsyncadd %s799, 0
          %s815 = smul.addr %s812, 8
          %s816 = scalar_lea.hbm %s3, %s815
          %s817 = sshll.u32 %s802, 4
          %s818 = int_to_ptr.vmem [resolvable:$true] %s817
          %s819 = sshll.u32 %s816, 4
          %s820 = int_to_ptr.hbm [resolvable:$true] %s819
          %825 = dma.vmem_to_hbm [thread:$0]  %s818, 256, %s820, %s799, 128, 896, 8
        $region138: #{aaa_block_forward.1} parent=105 // pred_fallthru
          _
      $region106: #{aaa_block_forward.1} parent=5 // pred_fallthru
        _
      %p826 = scmp.le.s32.totalorder 2, %s12
      // Predicated region
      $region139: #{aaa_block_forward.1} parent=5 // pred_check
        %p827 = pneg %p826
      $region140: #{aaa_block_forward.1} parent=5 // pred_check_branch
        %829 = sbr.rel (%p827) target = $region142
      $region141: #{aaa_block_forward.1} parent=5 // pred_region
        %s830 = ssub.s32 %s12, 2
        // Predicated region
        $region143: #{aaa_block_forward.1} parent=141 // pred_check
          %p831 = pneg %p181
        $region144: #{aaa_block_forward.1} parent=141 // pred_check_branch
          %833 = sbr.rel (%p831) target = $region146
        $region145: #{aaa_block_forward.1} parent=141 // pred_region
          %s834 = sand.u32 %s166, 1
          %s835 = scalar_lea.sflag [#allocation6], %s834
          %s836 = sand.u32 %s166, 1
          %s837 = smul.addr %s836, 16
          %s838 = scalar_lea.vmem [#allocation5], %s837
          %840 = dma.done %s835, 256
        $region146: #{aaa_block_forward.1} parent=141 // pred_fallthru
          _
      $region142: #{aaa_block_forward.1} parent=5 // pred_fallthru
        _
    $region6: #{aaa_block_forward.1} parent=1 // loop_footer
      %s16 = sadd.s32 1, %s12
    $region7: #{aaa_block_forward.1} parent=1 // loop_footer_branch
      %11 = sbr.rel target = $region3
    $region8: #{aaa_block_forward.1} parent=1 // loop_exit
      _
    %841 = vsyncpa [#allocation6], 1
    %s842 = scalar_lea.sflag [#allocation6], 1
    %843 = vsyncpa %s842, 1

</llo_original>
